<compile_context>
chip_gen: v7x
topology: tpu7x:2x2x1
jax: 0.10.0
libtpu: 0.0.40
codegen_flags: <defaults>
</compile_context>

<pallas_src>
import functools

import jax
import jax.numpy as jnp
from jax.experimental import pallas as pl
from jax.experimental.pallas import tpu as pltpu


def _wbce_kernel(x_ref, y_ref, out_ref, pos_cnt, sum_a, sum_b, *,
                 threshold, max_clamp, n_rows):
    i = pl.program_id(1)  # N (reduction) step; grid = (C tiles, N tiles)

    @pl.when(i == 0)
    def _init():
        pos_cnt[...] = jnp.zeros_like(pos_cnt)
        sum_a[...] = jnp.zeros_like(sum_a)
        sum_b[...] = jnp.zeros_like(sum_b)

    x = x_ref[...].astype(jnp.float32)   # (block_n, block_c)
    y = y_ref[...].astype(jnp.float32)   # (block_n, block_c)

    # softplus(-x), numerically stable (identical to PyTorch's formulation):
    #   log1p(exp(-|x|)) + max(-x, 0)
    sp = jnp.log1p(jnp.exp(-jnp.abs(x))) + jnp.maximum(-x, 0.0)

    pos_cnt[...] += jnp.sum((y > threshold).astype(jnp.float32),
                            axis=0, keepdims=True)
    sum_a[...] += jnp.sum((1.0 - y) * x + sp, axis=0, keepdims=True)
    sum_b[...] += jnp.sum(y * sp, axis=0, keepdims=True)

    @pl.when(i == pl.num_programs(1) - 1)
    def _finalize():
        # pos_count == 0 -> N/0 = +inf -> clipped to max_clamp
        # (matches torch.clamp).  Exact divide: runs once per C tile only.
        pw = jnp.clip(jnp.float32(n_rows) / pos_cnt[...], 1.0, max_clamp)
        out_ref[...] = sum_a[...] + (pw - 1.0) * sum_b[...]


def _round_up(a, b):
    return (a + b - 1) // b * b


def wbce_with_logits(logits, targets, threshold: float = 0.5,
                     max_clamp: float = 200.0, *,
                     block_n=None, block_c=None):
    """Pallas TPU implementation of WBCEWithLogits.forward. Returns a scalar."""
    assert logits.shape == targets.shape and logits.ndim == 2
    n, c = logits.shape

    # Sublane granularity depends on storage dtype: 8 (4B), 16 (2B), 32 (1B).
    itemsize = max(jnp.dtype(logits.dtype).itemsize,
                   jnp.dtype(targets.dtype).itemsize, 1)
    sub = max(8, 32 // itemsize)

    if block_c is None:
        block_c = min(_round_up(c, 128), 1024)   # lane-dense, multiple of 128
    if block_n is None:
        block_n = min(_round_up(n, sub), 512)    # sublane-aligned rows
    block_c = _round_up(block_c, 128)
    block_n = _round_up(block_n, sub)

    n_pad = _round_up(n, block_n)
    c_pad = _round_up(c, block_c)

    if (n_pad, c_pad) != (n, c):
        # Padded elements contribute exactly 0 to every partial:
        #   x = -100  ->  (1 - y) * x + softplus(-x) == 0
        #   y = 0     ->  never counted as a positive, y * sp == 0
        logits = jnp.pad(logits, ((0, n_pad - n), (0, c_pad - c)),
                         constant_values=-100.0)
        targets = jnp.pad(targets, ((0, n_pad - n), (0, c_pad - c)),
                          constant_values=0)

    grid = (c_pad // block_c, n_pad // block_n)  # (C parallel, N reduction last)

    kernel = functools.partial(_wbce_kernel,
                               threshold=float(threshold),
                               max_clamp=float(max_clamp),
                               n_rows=n)

    in_bytes = n * c * (jnp.dtype(logits.dtype).itemsize
                        + jnp.dtype(targets.dtype).itemsize)
    cost = pl.CostEstimate(flops=10 * n * c,
                           transcendentals=2 * n * c,
                           bytes_accessed=in_bytes + 4 * c_pad)

    col_sums = pl.pallas_call(
        kernel,
        out_shape=jax.ShapeDtypeStruct((1, c_pad), jnp.float32),
        grid_spec=pltpu.PrefetchScalarGridSpec(
            num_scalar_prefetch=0,
            grid=grid,
            in_specs=[
                pl.BlockSpec((block_n, block_c), lambda j, i: (i, j)),
                pl.BlockSpec((block_n, block_c), lambda j, i: (i, j)),
            ],
            out_specs=pl.BlockSpec((1, block_c), lambda j, i: (0, j)),
            scratch_shapes=[
                pltpu.VMEM((1, block_c), jnp.float32),  # pos_count
                pltpu.VMEM((1, block_c), jnp.float32),  # sum_A
                pltpu.VMEM((1, block_c), jnp.float32),  # sum_B
            ],
        ),
        compiler_params=pltpu.CompilerParams(
            dimension_semantics=("parallel", "arbitrary"),
        ),
        cost_estimate=cost,
    )(logits, targets)

    # Tiny final reduction + mean; 1/(N*C) is a host-side constant.  Padded
    # columns contribute exactly zero.
    return jnp.sum(col_sums) * (1.0 / float(n * c))


def _reference(logits, targets, threshold=0.5, max_clamp=200.0):
    # Pure-JAX reference mirroring the PyTorch module (sanity check only).
    n = targets.shape[0]
    x = logits.astype(jnp.float32)
    y = targets.astype(jnp.float32)
    pos_count = jnp.sum((y > threshold).astype(jnp.float32), axis=0)
    pw = jnp.clip(jnp.float32(n) / pos_count, 1.0, max_clamp)
    log_term = jnp.log1p(jnp.exp(-jnp.abs(x)))
    loss = (1.0 - y) * x + (1.0 + (pw - 1.0) * y) * (log_term + jnp.maximum(-x, 0.0))
    return jnp.mean(loss)


if __name__ == "__main__":
    key = jax.random.PRNGKey(0)
    k1, k2, k3, k4 = jax.random.split(key, 4)

    # Case 1: small, non-tile-aligned (exercises padding) with explicit small
    # blocks so the grid has multiple C tiles and multiple N (reduction) steps.
    N1, C1 = 24, 160
    logits1 = jax.random.normal(k1, (N1, C1), dtype=jnp.float32)
    targets1 = (jax.random.uniform(k2, (N1, C1)) > 0.5).astype(jnp.float32)
    loss1 = jax.block_until_ready(
        wbce_with_logits(logits1, targets1, block_n=8, block_c=128))
    ref1 = jax.block_until_ready(_reference(logits1, targets1))
    assert jnp.allclose(loss1, ref1, rtol=1e-4, atol=1e-5), (loss1, ref1)

    # Case 2: bf16 storage dtype (half the HBM bytes), default tiling.
    N2, C2 = 64, 256
    logits2 = jax.random.normal(k3, (N2, C2), dtype=jnp.float32).astype(jnp.bfloat16)
    targets2 = (jax.random.uniform(k4, (N2, C2)) > 0.5).astype(jnp.bfloat16)
    loss2 = jax.block_until_ready(wbce_with_logits(logits2, targets2))
    ref2 = jax.block_until_ready(
        _reference(logits2.astype(jnp.float32), targets2.astype(jnp.float32)))
    assert jnp.allclose(loss2, ref2, rtol=1e-4, atol=1e-5), (loss2, ref2)

    print("KERNEL_OK")
</pallas_src>

<mosaic_0001>
module attributes {stable_mosaic.version = 11 : i64} {
  func.func @_wbce_kernel(%arg0: i32, %arg1: i32, %arg2: memref<8x128xf32, #tpu.memory_space<vmem>>, %arg3: memref<8x128xf32, #tpu.memory_space<vmem>>, %arg4: memref<1x128xf32, #tpu.memory_space<vmem>>, %arg5: memref<1x128xf32, #tpu.memory_space<vmem>>, %arg6: memref<1x128xf32, #tpu.memory_space<vmem>>, %arg7: memref<1x128xf32, #tpu.memory_space<vmem>>) attributes {dimension_semantics = [#tpu.dimension_semantics<parallel>, #tpu.dimension_semantics<arbitrary>], iteration_bounds = array<i64: 2, 3>, scalar_prefetch = 0 : i64, scratch_operands = 3 : i64, tpu.core_type = #tpu.core_type<tc>, window_params = [{transform_indices = @transform_0, window_bounds = array<i64: 8, 128>}, {transform_indices = @transform_1, window_bounds = array<i64: 8, 128>}, {transform_indices = @transform_2, window_bounds = array<i64: 1, 128>}]} {
    %c0_i32 = arith.constant 0 : i32
    %0 = arith.cmpi eq, %arg1, %c0_i32 : i32
    %1 = arith.extui %0 : i1 to i32
    %c0_i32_0 = arith.constant 0 : i32
    %2 = arith.cmpi ne, %1, %c0_i32_0 : i32
    scf.if %2 {
      %cst_24 = arith.constant 0.000000e+00 : f32
      %42 = vector.broadcast %cst_24 : f32 to vector<1x128xf32>
      %c0_25 = arith.constant 0 : index
      %c0_26 = arith.constant 0 : index
      %43 = vector.load %arg5[%c0_25, %c0_26] : memref<1x128xf32, #tpu.memory_space<vmem>>, vector<1x128xf32>
      tpu.vector_store %arg5[%c0_25, %c0_26], %42 {strides = array<i32>} : memref<1x128xf32, #tpu.memory_space<vmem>>, vector<1x128xf32>,
      %cst_27 = arith.constant 0.000000e+00 : f32
      %44 = vector.broadcast %cst_27 : f32 to vector<1x128xf32>
      %c0_28 = arith.constant 0 : index
      %c0_29 = arith.constant 0 : index
      %45 = vector.load %arg6[%c0_28, %c0_29] : memref<1x128xf32, #tpu.memory_space<vmem>>, vector<1x128xf32>
      tpu.vector_store %arg6[%c0_28, %c0_29], %44 {strides = array<i32>} : memref<1x128xf32, #tpu.memory_space<vmem>>, vector<1x128xf32>,
      %cst_30 = arith.constant 0.000000e+00 : f32
      %46 = vector.broadcast %cst_30 : f32 to vector<1x128xf32>
      %c0_31 = arith.constant 0 : index
      %c0_32 = arith.constant 0 : index
      %47 = vector.load %arg7[%c0_31, %c0_32] : memref<1x128xf32, #tpu.memory_space<vmem>>, vector<1x128xf32>
      tpu.vector_store %arg7[%c0_31, %c0_32], %46 {strides = array<i32>} : memref<1x128xf32, #tpu.memory_space<vmem>>, vector<1x128xf32>,
    } else {
    }
    %c0 = arith.constant 0 : index
    %c0_1 = arith.constant 0 : index
    %3 = vector.load %arg2[%c0, %c0_1] : memref<8x128xf32, #tpu.memory_space<vmem>>, vector<8x128xf32>
    %c0_2 = arith.constant 0 : index
    %c0_3 = arith.constant 0 : index
    %4 = vector.load %arg3[%c0_2, %c0_3] : memref<8x128xf32, #tpu.memory_space<vmem>>, vector<8x128xf32>
    %5 = math.absf %3 : vector<8x128xf32>
    %cst = arith.constant 0.000000e+00 : f32
    %6 = vector.broadcast %cst : f32 to vector<8x128xf32>
    %7 = arith.subf %6, %5 : vector<8x128xf32>
    %8 = math.exp %7 : vector<8x128xf32>
    %9 = math.log1p %8 : vector<8x128xf32>
    %cst_4 = arith.constant 0.000000e+00 : f32
    %10 = vector.broadcast %cst_4 : f32 to vector<8x128xf32>
    %11 = arith.subf %10, %3 : vector<8x128xf32>
    %cst_5 = arith.constant 0.000000e+00 : f32
    %12 = vector.broadcast %cst_5 : f32 to vector<8x128xf32>
    %13 = arith.maximumf %11, %12 : vector<8x128xf32>
    %14 = arith.addf %9, %13 : vector<8x128xf32>
    %c0_6 = arith.constant 0 : index
    %c0_7 = arith.constant 0 : index
    %15 = vector.load %arg5[%c0_6, %c0_7] : memref<1x128xf32, #tpu.memory_space<vmem>>, vector<1x128xf32>
    %cst_8 = arith.constant 5.000000e-01 : f32
    %16 = vector.broadcast %cst_8 : f32 to vector<8x128xf32>
    %17 = arith.cmpf ogt, %4, %16 : vector<8x128xf32>
    %18 = arith.extui %17 : vector<8x128xi1> to vector<8x128xi32>
    %19 = arith.sitofp %18 : vector<8x128xi32> to vector<8x128xf32>
    %cst_9 = arith.constant dense<0.000000e+00> : vector<128xf32>
    %20 = vector.multi_reduction <add>, %19, %cst_9 [0] : vector<8x128xf32> to vector<128xf32>
    %21 = vector.shape_cast %20 : vector<128xf32> to vector<1x128xf32>
    %22 = arith.addf %15, %21 : vector<1x128xf32>
    %c0_10 = arith.constant 0 : index
    %c0_11 = arith.constant 0 : index
    %23 = vector.load %arg5[%c0_10, %c0_11] : memref<1x128xf32, #tpu.memory_space<vmem>>, vector<1x128xf32>
    tpu.vector_store %arg5[%c0_10, %c0_11], %22 {strides = array<i32>} : memref<1x128xf32, #tpu.memory_space<vmem>>, vector<1x128xf32>,
    %c0_12 = arith.constant 0 : index
    %c0_13 = arith.constant 0 : index
    %24 = vector.load %arg6[%c0_12, %c0_13] : memref<1x128xf32, #tpu.memory_space<vmem>>, vector<1x128xf32>
    %cst_14 = arith.constant 1.000000e+00 : f32
    %25 = vector.broadcast %cst_14 : f32 to vector<8x128xf32>
    %26 = arith.subf %25, %4 : vector<8x128xf32>
    %27 = arith.mulf %26, %3 : vector<8x128xf32>
    %28 = arith.addf %27, %14 : vector<8x128xf32>
    %cst_15 = arith.constant dense<0.000000e+00> : vector<128xf32>
    %29 = vector.multi_reduction <add>, %28, %cst_15 [0] : vector<8x128xf32> to vector<128xf32>
    %30 = vector.shape_cast %29 : vector<128xf32> to vector<1x128xf32>
    %31 = arith.addf %24, %30 : vector<1x128xf32>
    %c0_16 = arith.constant 0 : index
    %c0_17 = arith.constant 0 : index
    %32 = vector.load %arg6[%c0_16, %c0_17] : memref<1x128xf32, #tpu.memory_space<vmem>>, vector<1x128xf32>
    tpu.vector_store %arg6[%c0_16, %c0_17], %31 {strides = array<i32>} : memref<1x128xf32, #tpu.memory_space<vmem>>, vector<1x128xf32>,
    %c0_18 = arith.constant 0 : index
    %c0_19 = arith.constant 0 : index
    %33 = vector.load %arg7[%c0_18, %c0_19] : memref<1x128xf32, #tpu.memory_space<vmem>>, vector<1x128xf32>
    %34 = arith.mulf %4, %14 : vector<8x128xf32>
    %cst_20 = arith.constant dense<0.000000e+00> : vector<128xf32>
    %35 = vector.multi_reduction <add>, %34, %cst_20 [0] : vector<8x128xf32> to vector<128xf32>
    %36 = vector.shape_cast %35 : vector<128xf32> to vector<1x128xf32>
    %37 = arith.addf %33, %36 : vector<1x128xf32>
    %c0_21 = arith.constant 0 : index
    %c0_22 = arith.constant 0 : index
    %38 = vector.load %arg7[%c0_21, %c0_22] : memref<1x128xf32, #tpu.memory_space<vmem>>, vector<1x128xf32>
    tpu.vector_store %arg7[%c0_21, %c0_22], %37 {strides = array<i32>} : memref<1x128xf32, #tpu.memory_space<vmem>>, vector<1x128xf32>,
    %c2_i32 = arith.constant 2 : i32
    %39 = arith.cmpi eq, %arg1, %c2_i32 : i32
    %40 = arith.extui %39 : i1 to i32
    %c0_i32_23 = arith.constant 0 : i32
    %41 = arith.cmpi ne, %40, %c0_i32_23 : i32
    scf.if %41 {
      %c0_24 = arith.constant 0 : index
      %c0_25 = arith.constant 0 : index
      %42 = vector.load %arg5[%c0_24, %c0_25] : memref<1x128xf32, #tpu.memory_space<vmem>>, vector<1x128xf32>
      %cst_26 = arith.constant 2.400000e+01 : f32
      %43 = vector.broadcast %cst_26 : f32 to vector<1x128xf32>
      %44 = arith.divf %43, %42 : vector<1x128xf32>
      %cst_27 = arith.constant 1.000000e+00 : f32
      %cst_28 = arith.constant 2.000000e+02 : f32
      %45 = vector.broadcast %cst_27 : f32 to vector<1x128xf32>
      %46 = arith.maximumf %45, %44 : vector<1x128xf32>
      %47 = vector.broadcast %cst_28 : f32 to vector<1x128xf32>
      %48 = arith.minimumf %47, %46 : vector<1x128xf32>
      %c0_29 = arith.constant 0 : index
      %c0_30 = arith.constant 0 : index
      %49 = vector.load %arg6[%c0_29, %c0_30] : memref<1x128xf32, #tpu.memory_space<vmem>>, vector<1x128xf32>
      %cst_31 = arith.constant 1.000000e+00 : f32
      %50 = vector.broadcast %cst_31 : f32 to vector<1x128xf32>
      %51 = arith.subf %48, %50 : vector<1x128xf32>
      %c0_32 = arith.constant 0 : index
      %c0_33 = arith.constant 0 : index
      %52 = vector.load %arg7[%c0_32, %c0_33] : memref<1x128xf32, #tpu.memory_space<vmem>>, vector<1x128xf32>
      %53 = arith.mulf %51, %52 : vector<1x128xf32>
      %54 = arith.addf %49, %53 : vector<1x128xf32>
      %c0_34 = arith.constant 0 : index
      %c0_35 = arith.constant 0 : index
      %55 = vector.load %arg4[%c0_34, %c0_35] : memref<1x128xf32, #tpu.memory_space<vmem>>, vector<1x128xf32>
      tpu.vector_store %arg4[%c0_34, %c0_35], %54 {strides = array<i32>} : memref<1x128xf32, #tpu.memory_space<vmem>>, vector<1x128xf32>,
    } else {
    }
    return
  }
  func.func @transform_0(%arg0: i32, %arg1: i32) -> (i32, i32) {
    %c0_i32 = arith.constant 0 : i32
    return %arg1, %arg0 : i32, i32
  }
  func.func @transform_1(%arg0: i32, %arg1: i32) -> (i32, i32) {
    %c0_i32 = arith.constant 0 : i32
    return %arg1, %arg0 : i32, i32
  }
  func.func @transform_2(%arg0: i32, %arg1: i32) -> (i32, i32) {
    %c0_i32 = arith.constant 0 : i32
    %c0_i32_0 = arith.constant 0 : i32
    return %c0_i32, %arg0 : i32, i32
  }
}

</mosaic_0001>

<llo_original>
// kernel: tpu_custom_call.1
$region0: #{tpu_custom_call.1}
  #allocation0 [shape = 'u32[]', space=smem, size = 0x4, offset = 0x4, fixed_abs, tag = 'smem constant byte address 0x4 - core index']
  #allocation1 [shape = 'u32[144,128]{1,0:T(1,128)}', space=vmem, size = 0x12000, scoped, tag = 'internal scratch']
  #allocation2 [shape = 'f32[1,128]{1,0:T(1,128)}', space=vmem, size = 0x200, scoped, tag = 'scratch operand']
  #allocation3 [shape = 'f32[1,128]{1,0:T(1,128)}', space=vmem, size = 0x200, scoped, tag = 'scratch operand']
  #allocation4 [shape = 'f32[1,128]{1,0:T(1,128)}', space=vmem, size = 0x200, scoped, tag = 'scratch operand']
  %s0 = inlined_call_operand.hbm [shape: f32[24,256], index: 0, kind: input, shape index: {}]
  %s1 = inlined_call_operand.hbm [shape: f32[24,256], index: 1, kind: input, shape index: {}]
  %s2 = inlined_call_operand.hbm [shape: f32[1,256], index: 2, kind: output, shape index: {}]
  %s3 = sld [smem:[#allocation0]]
  $region57: #{tpu_custom_call.1} parent=0
    _
  %s5 = ssub.s32 1, %s3
  %s6 = scalar_select 0, %s5, %s3
  $region1: #{tpu_custom_call.1} parent=0
    #allocation5 [shape = 'u8[8192]{0}', space=vmem, size = 0x2000, scoped, tag = 'input window, operand 0']
    #allocation6 [shape = 's32[2]{0}', space=sflag, size = 0x8, scoped, tag = 'scoped memory for tpu_custom_call.1']
    #allocation7 [shape = 's32[2]{0}', space=sflag, size = 0x8, scoped, tag = 'scoped memory for tpu_custom_call.1']
    #allocation8 [shape = 'u8[8192]{0}', space=vmem, size = 0x2000, scoped, tag = 'input window, operand 1']
    #allocation9 [shape = 's32[2]{0}', space=sflag, size = 0x8, scoped, tag = 'scoped memory for tpu_custom_call.1']
    #allocation10 [shape = 'u8[1024]{0}', space=vmem, size = 0x400, scoped, tag = 'output window, operand 0']
    %7 = vsyncpa [#allocation6], 0
    %s8 = scalar_lea.sflag [#allocation6], 1
    %9 = vsyncpa %s8, 0
    %10 = vsyncpa [#allocation9], 0
    %s11 = scalar_lea.sflag [#allocation9], 1
    %12 = vsyncpa %s11, 0
    %13 = vsyncpa [#allocation7], 0
    %s14 = scalar_lea.sflag [#allocation7], 1
    %15 = vsyncpa %s14, 0
    loop: start=0, step=1, limit=8
    $region2: #{tpu_custom_call.1} parent=1 // loop_pre_header
      _
    $region3: #{tpu_custom_call.1} parent=1 // loop_header
      %s17 = sphi 0, %s21
      %p18 = scmp.ge.s32.totalorder %s17, 8
      %s24 = sphi 0, %s36
      %s25 = sphi 0, %s32
      %s26 = sphi 0, %s24
      %s27 = sphi 0, %s25
      %s28 = sphi 0, %s26
      %s29 = sphi 0, %s27
      %s41 = sphi 0, %s43
      %s44 = sphi 0, %s41
      %s45 = sphi 0, %s44
      %s61 = sphi 0, %s45
      %s69 = sphi 0, %s71
      %s72 = sphi 0, %s69
      %s73 = sphi 0, %s72
      %s89 = sphi 0, %s73
      %s95 = sphi 0, %s97
      %s98 = sphi 0, %s95
      %s99 = sphi 0, %s98
      %s115 = sphi 0, %s99
    $region4: #{tpu_custom_call.1} parent=1 // loop_header_branch
      %20 = sbr.rel (%p18) target = $region8
    $region5: #{tpu_custom_call.1} parent=1 // loop_body
      %s22 = ssub.s32 %s17, 1
      %s23 = ssub.s32 %s17, 2
      %s30 = sadd.s32 1, %s25
      %p31 = scmp.ge.s32.totalorder %s30, 3
      %s32 = scalar_select %p31, 0, %s30
      %s33 = sadd.s32 1, %s24
      %s34 = scalar_select %p31, %s33, %s24
      %p35 = scmp.ge.s32.totalorder %s34, 2
      %s36 = scalar_select %p35, 0, %s34
      %s37 = ssub.s32 %s25, %s32
      %s38 = ssub.s32 %s24, %s36
      %s39 = sor.u32 %s37, %s38
      %p40 = scmp.eq.s32.totalorder %s39, 0
      %s42 = sadd.s32 %s41, 1
      %s43 = scalar_select %p40, %s41, %s42
      %p46 = pneg %p40
      %p47 = scmp.eq.s32.totalorder %s17, 5
      %p48 = por %p46, %p47
      %p49 = scmp.ne.s32.totalorder %s41, %s44
      %p50 = scmp.eq.s32.totalorder %s17, 0
      %p51 = por %p49, %p50
      %p52 = scmp.ne.s32.totalorder %s41, %s44
      %p53 = scmp.eq.s32.totalorder %s22, 5
      %p54 = por %p52, %p53
      %p55 = scmp.ne.s32.totalorder %s44, %s45
      %p56 = scmp.eq.s32.totalorder %s22, 0
      %p57 = por %p55, %p56
      %p58 = scmp.ne.s32.totalorder %s44, %s45
      %p59 = scmp.eq.s32.totalorder %s23, 5
      %p60 = por %p58, %p59
      %p62 = scmp.ne.s32.totalorder %s45, %s61
      %p63 = scmp.eq.s32.totalorder %s23, 0
      %p64 = por %p62, %p63
      %s65 = ssub.s32 %s25, %s32
      %s66 = ssub.s32 %s24, %s36
      %s67 = sor.u32 %s65, %s66
      %p68 = scmp.eq.s32.totalorder %s67, 0
      %s70 = sadd.s32 %s69, 1
      %s71 = scalar_select %p68, %s69, %s70
      %p74 = pneg %p68
      %p75 = scmp.eq.s32.totalorder %s17, 5
      %p76 = por %p74, %p75
      %p77 = scmp.ne.s32.totalorder %s69, %s72
      %p78 = scmp.eq.s32.totalorder %s17, 0
      %p79 = por %p77, %p78
      %p80 = scmp.ne.s32.totalorder %s69, %s72
      %p81 = scmp.eq.s32.totalorder %s22, 5
      %p82 = por %p80, %p81
      %p83 = scmp.ne.s32.totalorder %s72, %s73
      %p84 = scmp.eq.s32.totalorder %s22, 0
      %p85 = por %p83, %p84
      %p86 = scmp.ne.s32.totalorder %s72, %s73
      %p87 = scmp.eq.s32.totalorder %s23, 5
      %p88 = por %p86, %p87
      %p90 = scmp.ne.s32.totalorder %s73, %s89
      %p91 = scmp.eq.s32.totalorder %s23, 0
      %p92 = por %p90, %p91
      %s93 = ssub.s32 %s24, %s36
      %p94 = scmp.eq.s32.totalorder %s93, 0
      %s96 = sadd.s32 %s95, 1
      %s97 = scalar_select %p94, %s95, %s96
      %p100 = pneg %p94
      %p101 = scmp.eq.s32.totalorder %s17, 5
      %p102 = por %p100, %p101
      %p103 = scmp.ne.s32.totalorder %s95, %s98
      %p104 = scmp.eq.s32.totalorder %s17, 0
      %p105 = por %p103, %p104
      %p106 = scmp.ne.s32.totalorder %s95, %s98
      %p107 = scmp.eq.s32.totalorder %s22, 5
      %p108 = por %p106, %p107
      %p109 = scmp.ne.s32.totalorder %s98, %s99
      %p110 = scmp.eq.s32.totalorder %s22, 0
      %p111 = por %p109, %p110
      %p112 = scmp.ne.s32.totalorder %s98, %s99
      %p113 = scmp.eq.s32.totalorder %s23, 5
      %p114 = por %p112, %p113
      %p116 = scmp.ne.s32.totalorder %s99, %s115
      %p117 = scmp.eq.s32.totalorder %s23, 0
      %p118 = por %p116, %p117
      %p119 = scmp.le.s32.totalorder 1, %s17
      %p120 = scmp.lt.s32.totalorder %s17, 7
      %p121 = pnand %p119, %p120
      %p122 = pneg %p121
      // Predicated region
      $region9: #{tpu_custom_call.1} parent=5 // pred_check
        _
      $region10: #{tpu_custom_call.1} parent=5 // pred_check_branch
        %124 = sbr.rel (%p121) target = $region12
      $region11: #{tpu_custom_call.1} parent=5 // pred_region
        %s125 = ssub.s32 %s17, 1
      $region12: #{tpu_custom_call.1} parent=5 // pred_fallthru
        _
      %p126 = scmp.lt.s32.totalorder %s17, 6
      // Predicated region
      $region13: #{tpu_custom_call.1} parent=5 // pred_check
        %p127 = pneg %p126
      $region14: #{tpu_custom_call.1} parent=5 // pred_check_branch
        %129 = sbr.rel (%p127) target = $region16
      $region15: #{tpu_custom_call.1} parent=5 // pred_region
        // Predicated region
        $region17: #{tpu_custom_call.1} parent=15 // pred_check
          %p130 = pneg %p51
        $region18: #{tpu_custom_call.1} parent=15 // pred_check_branch
          %132 = sbr.rel (%p130) target = $region20
        $region19: #{tpu_custom_call.1} parent=15 // pred_region
          %s133 = sand.u32 %s41, 1
          %s134 = scalar_lea.sflag [#allocation6], %s133
          %s135 = sand.u32 %s41, 1
          %s136 = smul.addr %s135, 8
          %s137 = scalar_lea.vmem [#allocation5], %s136
          %s139 = ssub.s32 128, 128
          %140 = vsyncadd %s134, %s139
          %s141 = smul.addr %s25, 2
          %s142 = sadd.s32 %s24, %s141
          %s143 = smul.addr %s142, 128
          %s144 = scalar_lea.hbm %s0, %s143
          %s146 = sshll.u32 %s137, 4
          %s147 = int_to_ptr.vmem [resolvable:$true] %s146
          %149 = dma.hbm_to_vmem [thread:$0]  %s144, 128, %s147, %s134
        $region20: #{tpu_custom_call.1} parent=15 // pred_fallthru
          _
        // Predicated region
        $region21: #{tpu_custom_call.1} parent=15 // pred_check
          %p150 = pneg %p79
        $region22: #{tpu_custom_call.1} parent=15 // pred_check_branch
          %152 = sbr.rel (%p150) target = $region24
        $region23: #{tpu_custom_call.1} parent=15 // pred_region
          %s153 = sand.u32 %s69, 1
          %s154 = scalar_lea.sflag [#allocation9], %s153
          %s155 = sand.u32 %s69, 1
          %s156 = smul.addr %s155, 8
          %s157 = scalar_lea.vmem [#allocation8], %s156
          %s159 = ssub.s32 128, 128
          %160 = vsyncadd %s154, %s159
          %s161 = smul.addr %s25, 2
          %s162 = sadd.s32 %s24, %s161
          %s163 = smul.addr %s162, 128
          %s164 = scalar_lea.hbm %s1, %s163
          %s166 = sshll.u32 %s157, 4
          %s167 = int_to_ptr.vmem [resolvable:$true] %s166
          %169 = dma.hbm_to_vmem [thread:$0]  %s164, 128, %s167, %s154
        $region24: #{tpu_custom_call.1} parent=15 // pred_fallthru
          _
      $region16: #{tpu_custom_call.1} parent=5 // pred_fallthru
        _
      %p170 = scmp.le.s32.totalorder 1, %s17
      %p171 = scmp.lt.s32.totalorder %s17, 7
      %p172 = pnand %p170, %p171
      %p173 = pneg %p172
      // Predicated region
      $region25: #{tpu_custom_call.1} parent=5 // pred_check
        _
      $region26: #{tpu_custom_call.1} parent=5 // pred_check_branch
        %175 = sbr.rel (%p172) target = $region28
      $region27: #{tpu_custom_call.1} parent=5 // pred_region
        %s176 = ssub.s32 %s17, 1
        %s177 = sand.u32 %s44, 1
        %s178 = scalar_lea.sflag [#allocation6], %s177
        %s179 = sand.u32 %s44, 1
        %s180 = smul.addr %s179, 8
        %s181 = scalar_lea.vmem [#allocation5], %s180
        // Predicated region
        $region29: #{tpu_custom_call.1} parent=27 // pred_check
          %p182 = pneg %p57
        $region30: #{tpu_custom_call.1} parent=27 // pred_check_branch
          %184 = sbr.rel (%p182) target = $region32
        $region31: #{tpu_custom_call.1} parent=27 // pred_region
          %185 = dma.done %s178, 128
        $region32: #{tpu_custom_call.1} parent=27 // pred_fallthru
          _
        %s186 = sand.u32 %s72, 1
        %s187 = scalar_lea.sflag [#allocation9], %s186
        %s188 = sand.u32 %s72, 1
        %s189 = smul.addr %s188, 8
        %s190 = scalar_lea.vmem [#allocation8], %s189
        // Predicated region
        $region33: #{tpu_custom_call.1} parent=27 // pred_check
          %p191 = pneg %p85
        $region34: #{tpu_custom_call.1} parent=27 // pred_check_branch
          %193 = sbr.rel (%p191) target = $region36
        $region35: #{tpu_custom_call.1} parent=27 // pred_region
          %194 = dma.done %s187, 128
        $region36: #{tpu_custom_call.1} parent=27 // pred_fallthru
          _
        %s195 = sand.u32 %s44, 1
        %s196 = scalar_lea.sflag [#allocation6], %s195
        %s197 = sand.u32 %s44, 1
        %s198 = smul.addr %s197, 8
        %s199 = scalar_lea.vmem [#allocation5], %s198
        %p200 = pneg %p57
        %p201 = pneg %p54
        %s202 = sand.u32 %s72, 1
        %s203 = scalar_lea.sflag [#allocation9], %s202
        %s204 = sand.u32 %s72, 1
        %s205 = smul.addr %s204, 8
        %s206 = scalar_lea.vmem [#allocation8], %s205
        %p207 = pneg %p85
        %p208 = pneg %p82
        %p209 = pneg %p111
        %p210 = pneg %p108
        %s211 = sand.u32 %s98, 1
        %s212 = scalar_lea.sflag [#allocation7], %s211
        %s213 = sand.u32 %s98, 1
        %s214 = scalar_lea.vmem [#allocation10], %s213
        %p215 = scmp.eq.s32.totalorder %s27, 0
        // Predicated region
        $region37: #{tpu_custom_call.1} parent=27 // pred_check
          %p216 = pneg %p215
        $region38: #{tpu_custom_call.1} parent=27 // pred_check_branch
          %218 = sbr.rel (%p216) target = $region40
        $region39: #{tpu_custom_call.1} parent=27 // pred_region
          %219 = vst [vmem:[#allocation2] sm:$0x1] 0.0
          %220 = vst [vmem:[#allocation3] sm:$0x1] 0.0
          %221 = vst [vmem:[#allocation4] sm:$0x1] 0.0
        $region40: #{tpu_custom_call.1} parent=27 // pred_fallthru
          _
        %v222 = vld [vmem:[%s181] sm:$0xff]
        %v223 = vld [vmem:[%s190] sm:$0xff]
        %v224 = vand.u32 2147483647, %v222
        %v225 = vsub.f32 0.0, %v224
        %v226 = vmul.f32 %v225, 1.442695
        %v227 = vpow.pop %v226
        %v228 = vadd.f32 %v227, 1.0
        %v229 = vlog2.pop %v228
        %v230 = vmul.f32 %v229, 0.6931472
        %v231 = vmul.f32 -0.5, %v227
        %v232 = vadd.f32 %v231, 1.0
        %v233 = vmul.f32 %v232, %v227
        %v234 = vand.u32 2147483647, %v227
        %vm235 = vcmp.lt.f32.partialorder %v234, 0.0004427343
        %v236 = vsel %vm235, %v233, %v230
        %v237 = vsub.f32 0.0, %v222
        %v238 = vmax.f32 %v237, 0.0
        %v239 = vadd.f32 %v236, %v238
        %v240 = vld [vmem:[#allocation2] sm:$0x1]
        %vm241 = vcmp.gt.f32.partialorder %v223, 0.5
        %v242 = vsel %vm241, 1, 0
        %v243 = vcvt.s32.f32 %v242
        %v244 = vrot.slane %v243, 4
        %v245 = vadd.f32 %v243, %v244
        %v246 = vrot.slane %v245, 2
        %v247 = vadd.f32 %v245, %v246
        %v248 = vrot.slane %v247, 1
        %v249 = vadd.f32 %v247, %v248
        %v250 = vadd.f32 %v240, %v249
        %251 = vst [vmem:[#allocation2] sm:$0x1] %v250
        %v252 = vld [vmem:[#allocation3] sm:$0x1]
        %v253 = vsub.f32 1.0, %v223
        %v254 = vmul.f32 %v253, %v222
        %v255 = vadd.f32 %v254, %v239
        %v256 = vrot.slane %v255, 4
        %v257 = vadd.f32 %v255, %v256
        %v258 = vrot.slane %v257, 2
        %v259 = vadd.f32 %v257, %v258
        %v260 = vrot.slane %v259, 1
        %v261 = vadd.f32 %v259, %v260
        %v262 = vadd.f32 %v252, %v261
        %263 = vst [vmem:[#allocation3] sm:$0x1] %v262
        %v264 = vld [vmem:[#allocation4] sm:$0x1]
        %v265 = vmul.f32 %v223, %v239
        %v266 = vrot.slane %v265, 4
        %v267 = vadd.f32 %v265, %v266
        %v268 = vrot.slane %v267, 2
        %v269 = vadd.f32 %v267, %v268
        %v270 = vrot.slane %v269, 1
        %v271 = vadd.f32 %v269, %v270
        %v272 = vadd.f32 %v264, %v271
        %273 = vst [vmem:[#allocation4] sm:$0x1] %v272
        %p274 = scmp.eq.s32.totalorder %s27, 2
        // Predicated region
        $region41: #{tpu_custom_call.1} parent=27 // pred_check
          %p275 = pneg %p274
        $region42: #{tpu_custom_call.1} parent=27 // pred_check_branch
          %277 = sbr.rel (%p275) target = $region44
        $region43: #{tpu_custom_call.1} parent=27 // pred_region
          %v278 = vld [vmem:[#allocation2] sm:$0x1]
          %v279 = vrcp.pop %v278
          %v280 = vmul.f32 24.0, %v279
          %v281 = vmax.f32 %v280, 1.0
          %v282 = vmin.f32 %v281, 200.0
          %v283 = vld [vmem:[#allocation3] sm:$0x1]
          %v284 = vsub.f32 %v282, 1.0
          %v285 = vld [vmem:[#allocation4] sm:$0x1]
          %v286 = vmul.f32 %v284, %v285
          %v287 = vadd.f32 %v283, %v286
          %288 = vst [vmem:[%s214] sm:$0x1] %v287
        $region44: #{tpu_custom_call.1} parent=27 // pred_fallthru
          _
        %s289 = sand.u32 %s98, 1
        %s290 = scalar_lea.sflag [#allocation7], %s289
        %s291 = sand.u32 %s98, 1
        %s292 = scalar_lea.vmem [#allocation10], %s291
        // Predicated region
        $region45: #{tpu_custom_call.1} parent=27 // pred_check
          %p293 = pneg %p108
        $region46: #{tpu_custom_call.1} parent=27 // pred_check_branch
          %295 = sbr.rel (%p293) target = $region48
        $region47: #{tpu_custom_call.1} parent=27 // pred_region
          %s297 = ssub.s32 16, 16
          %298 = vsyncadd %s290, %s297
          %s299 = smul.addr %s26, 16
          %s300 = scalar_lea.hbm %s2, %s299
          %s302 = sshll.u32 %s292, 4
          %s303 = int_to_ptr.vmem [resolvable:$true] %s302
          %305 = dma.vmem_to_hbm [thread:$0]  %s303, 16, %s300, %s290
        $region48: #{tpu_custom_call.1} parent=27 // pred_fallthru
          _
      $region28: #{tpu_custom_call.1} parent=5 // pred_fallthru
        _
      %p306 = scmp.le.s32.totalorder 2, %s17
      // Predicated region
      $region49: #{tpu_custom_call.1} parent=5 // pred_check
        %p307 = pneg %p306
      $region50: #{tpu_custom_call.1} parent=5 // pred_check_branch
        %309 = sbr.rel (%p307) target = $region52
      $region51: #{tpu_custom_call.1} parent=5 // pred_region
        %s310 = ssub.s32 %s17, 2
        // Predicated region
        $region53: #{tpu_custom_call.1} parent=51 // pred_check
          %p311 = pneg %p114
        $region54: #{tpu_custom_call.1} parent=51 // pred_check_branch
          %313 = sbr.rel (%p311) target = $region56
        $region55: #{tpu_custom_call.1} parent=51 // pred_region
          %s314 = sand.u32 %s99, 1
          %s315 = scalar_lea.sflag [#allocation7], %s314
          %s316 = sand.u32 %s99, 1
          %s317 = scalar_lea.vmem [#allocation10], %s316
          %318 = dma.done %s315, 16
        $region56: #{tpu_custom_call.1} parent=51 // pred_fallthru
          _
      $region52: #{tpu_custom_call.1} parent=5 // pred_fallthru
        _
    $region6: #{tpu_custom_call.1} parent=1 // loop_footer
      %s21 = sadd.s32 1, %s17
    $region7: #{tpu_custom_call.1} parent=1 // loop_footer_branch
      %16 = sbr.rel target = $region3
    $region8: #{tpu_custom_call.1} parent=1 // loop_exit
      _
    %319 = vsyncpa [#allocation6], 1
    %s320 = scalar_lea.sflag [#allocation6], 1
    %321 = vsyncpa %s320, 1
    %322 = vsyncpa [#allocation9], 1
    %s323 = scalar_lea.sflag [#allocation9], 1
    %324 = vsyncpa %s323, 1
    %325 = vsyncpa [#allocation7], 1
    %s326 = scalar_lea.sflag [#allocation7], 1
    %327 = vsyncpa %s326, 1

</llo_original>
